<compile_context>
chip_gen: v7x
topology: tpu7x:2x2x1
jax: 0.10.0
libtpu: 0.0.40
codegen_flags: <defaults>
</compile_context>

<pallas_src>
import functools

import jax
import jax.numpy as jnp
from jax.experimental import pallas as pl
from jax.experimental.pallas import tpu as pltpu


def _round_up(x, m):
    return (x + m - 1) // m * m


def _embed_gather_kernel(ids_ref, table_hbm, out_ref, rows_vmem, copy_sems,
                         *, tok_blk, n_inflight):
    """One grid step gathers `tok_blk` embedding rows.

    ids_ref   : (n_tok_pad,) int32, SMEM (scalar prefetch)
    table_hbm : (vocab, d_model), HBM ref (memory_space=pl.ANY)
    out_ref   : (tok_blk, d_model) output tile, VMEM
    rows_vmem : (tok_blk, d_model) VMEM scratch (DMA landing buffer)
    copy_sems : (n_inflight,) DMA semaphores (rolling window)
    """
    base = pl.program_id(0) * tok_blk

    def row_copy(t, src_row):
        # Descriptor for "token-local slot t <- table row src_row".
        return pltpu.make_async_copy(
            table_hbm.at[pl.ds(src_row, 1), :],
            rows_vmem.at[pl.ds(t, 1), :],
            copy_sems.at[t % n_inflight],
        )

    def start(t):
        row_copy(t, ids_ref[base + t]).start()

    def wait(t):
        # The wait only needs a same-shaped descriptor + the semaphore slot;
        # using source row 0 avoids an extra SMEM scalar read.
        row_copy(t, 0).wait()

    # Software-pipelined gather: at most `n_inflight` DMAs outstanding.
    @pl.loop(0, n_inflight)           # prologue: fill the window
    def _(t):
        start(t)

    @pl.loop(n_inflight, tok_blk)     # steady state: retire one, issue one
    def _(t):
        wait(t - n_inflight)
        start(t)

    @pl.loop(tok_blk - n_inflight, tok_blk)   # drain the tail
    def _(t):
        wait(t)

    # Single lane-dense tile store; Pallas pipelines the HBM writeback.
    out_ref[...] = rows_vmem[...]


def embedder_forward(x, table, *, tok_blk=256, n_inflight=16):
    """Equivalent of Embedder.forward: table[x] with x of shape (batch, seq)."""
    B, S = x.shape
    _, D = table.shape
    n_tok = B * S

    # Tokens per grid step: large enough to amortize ~0.35us/step grid
    # overhead, rounded to the 8-row sublane quantum, clamped to the problem.
    tok_blk = max(8, _round_up(min(int(tok_blk), _round_up(n_tok, 8)), 8))
    n_tok_pad = _round_up(n_tok, tok_blk)
    n_blocks = n_tok_pad // tok_blk
    # Rolling-window depth: bounded, and never larger than the block itself.
    n_inflight = max(1, min(int(n_inflight), tok_blk))

    ids_flat = x.reshape(-1).astype(jnp.int32)
    if n_tok_pad != n_tok:
        # Pad ragged tail with row 0 (valid id); padded rows are sliced off below.
        ids_flat = jnp.pad(ids_flat, (0, n_tok_pad - n_tok))

    out_flat = pl.pallas_call(
        functools.partial(_embed_gather_kernel, tok_blk=tok_blk,
                          n_inflight=n_inflight),
        out_shape=jax.ShapeDtypeStruct((n_tok_pad, D), table.dtype),
        grid_spec=pltpu.PrefetchScalarGridSpec(
            num_scalar_prefetch=1,                            # ids -> SMEM
            grid=(n_blocks,),
            in_specs=[pl.BlockSpec(memory_space=pl.ANY)],     # table stays in HBM
            out_specs=pl.BlockSpec((tok_blk, D), lambda i, ids: (i, 0)),
            scratch_shapes=[
                pltpu.VMEM((tok_blk, D), table.dtype),
                pltpu.SemaphoreType.DMA((n_inflight,)),
            ],
        ),
        compiler_params=pltpu.CompilerParams(
            dimension_semantics=("parallel",),
        ),
    )(ids_flat, table)

    if n_tok_pad != n_tok:
        out_flat = out_flat[:n_tok]
    return out_flat.reshape(B, S, D)


if __name__ == "__main__":
    # Small shapes consistent with the module; d_model chosen lane-dense (128).
    vocab_size, d_model = 64, 128
    batch, seq = 2, 8

    key = jax.random.PRNGKey(0)
    k_w, k_x = jax.random.split(key)

    # nn.Embedding default init: N(0, 1)
    embed_weight = jax.random.normal(k_w, (vocab_size, d_model), dtype=jnp.float32)
    x = jax.random.randint(k_x, (batch, seq), 0, vocab_size, dtype=jnp.int32)

    out = embedder_forward(x, embed_weight)
    out = jax.block_until_ready(out)

    ref = embed_weight[x]               # plain gather = nn.Embedding forward
    assert out.shape == (batch, seq, d_model)
    assert jnp.array_equal(out, ref), "mismatch vs reference gather"

    # Second check: multi-block grid + ragged-tail padding + pipelined window.
    k_w2, k_x2 = jax.random.split(k_w)
    w2 = jax.random.normal(k_w2, (96, 128), dtype=jnp.float32)
    x2 = jax.random.randint(k_x2, (3, 50), 0, 96, dtype=jnp.int32)
    out2 = jax.block_until_ready(embedder_forward(x2, w2, tok_blk=64, n_inflight=8))
    assert jnp.array_equal(out2, w2[x2]), "mismatch vs reference gather (ragged)"

    print("KERNEL_OK")
</pallas_src>

<mosaic_0001>
module attributes {stable_mosaic.version = 11 : i64} {
  func.func @_embed_gather_kernel(%arg0: i32, %arg1: memref<16xi32, #tpu.memory_space<smem>>, %arg2: memref<64x128xf32, #tpu.memory_space<any>>, %arg3: memref<16x128xf32, #tpu.memory_space<vmem>>, %arg4: memref<16x128xf32, #tpu.memory_space<vmem>>, %arg5: memref<16x!tpu.dma_semaphore, #tpu.memory_space<semaphore_mem>>) attributes {dimension_semantics = [#tpu.dimension_semantics<parallel>], iteration_bounds = array<i64: 1>, scalar_prefetch = 1 : i64, scratch_operands = 2 : i64, tpu.core_type = #tpu.core_type<tc>, window_params = [{}, {transform_indices = @transform_1, window_bounds = array<i64: 16, 128>}]} {
    %c16_i32 = arith.constant 16 : i32
    %0 = arith.muli %arg0, %c16_i32 : i32
    %c0_i32 = arith.constant 0 : i32
    %c16_i32_0 = arith.constant 16 : i32
    %1 = arith.addi %c0_i32, %c16_i32_0 : i32
    %c1_i32 = arith.constant 1 : i32
    scf.for %arg6 = %c0_i32 to %1 step %c1_i32  : i32 {
      %c1_i32_13 = arith.constant 1 : i32
      %6 = arith.muli %arg6, %c1_i32_13 : i32
      %c0_i32_14 = arith.constant 0 : i32
      %7 = arith.addi %c0_i32_14, %6 : i32
      %8 = arith.addi %0, %7 : i32
      %9 = arith.index_cast %8 : i32 to index
      %10 = memref.load %arg1[%9] : memref<16xi32, #tpu.memory_space<smem>>
      %c16_i32_15 = arith.constant 16 : i32
      %c0_i32_16 = arith.constant 0 : i32
      %11 = arith.cmpi eq, %c16_i32_15, %c0_i32_16 : i32
      %c1_i32_17 = arith.constant 1 : i32
      %12 = arith.select %11, %c1_i32_17, %c16_i32_15 : i32
      %13 = arith.remsi %7, %12 : i32
      %c0_i32_18 = arith.constant 0 : i32
      %14 = arith.cmpi ne, %13, %c0_i32_18 : i32
      %c0_i32_19 = arith.constant 0 : i32
      %15 = arith.cmpi slt, %13, %c0_i32_19 : i32
      %c0_i32_20 = arith.constant 0 : i32
      %16 = arith.cmpi slt, %12, %c0_i32_20 : i32
      %17 = arith.xori %15, %16 : i1
      %18 = arith.andi %17, %14 : i1
      %19 = arith.addi %13, %12 : i32
      %20 = arith.select %18, %19, %13 : i32
      %c0_i32_21 = arith.constant 0 : i32
      %21 = tpu.memref_slice %arg2[%10, %c0_i32_21] : memref<64x128xf32, #tpu.memory_space<any>> -> memref<1x128xf32, #tpu.memory_space<any>>
      %c0_i32_22 = arith.constant 0 : i32
      %22 = tpu.memref_slice %arg4[%7, %c0_i32_22] : memref<16x128xf32, #tpu.memory_space<vmem>> -> memref<1x128xf32, #tpu.memory_space<vmem>>
      %23 = tpu.memref_slice %arg5[%20] : memref<16x!tpu.dma_semaphore, #tpu.memory_space<semaphore_mem>> -> memref<1x!tpu.dma_semaphore, #tpu.memory_space<semaphore_mem>>
      %24 = tpu.memref_squeeze %23 : memref<1x!tpu.dma_semaphore, #tpu.memory_space<semaphore_mem>> -> memref<!tpu.dma_semaphore, #tpu.memory_space<semaphore_mem>>
      tpu.enqueue_dma source(%21 : memref<1x128xf32, #tpu.memory_space<any>>) target(%22 : memref<1x128xf32, #tpu.memory_space<vmem>>) target_semaphore(%24 : memref<!tpu.dma_semaphore, #tpu.memory_space<semaphore_mem>>)
    }
    %c16_i32_1 = arith.constant 16 : i32
    %c0_i32_2 = arith.constant 0 : i32
    %c0_i32_3 = arith.constant 0 : i32
    %2 = arith.addi %c0_i32_2, %c0_i32_3 : i32
    %c1_i32_4 = arith.constant 1 : i32
    scf.for %arg6 = %c0_i32_2 to %2 step %c1_i32_4  : i32 {
      %c1_i32_13 = arith.constant 1 : i32
      %6 = arith.muli %arg6, %c1_i32_13 : i32
      %c16_i32_14 = arith.constant 16 : i32
      %7 = arith.addi %c16_i32_14, %6 : i32
      %c16_i32_15 = arith.constant 16 : i32
      %8 = arith.subi %7, %c16_i32_15 : i32
      %c16_i32_16 = arith.constant 16 : i32
      %c0_i32_17 = arith.constant 0 : i32
      %9 = arith.cmpi eq, %c16_i32_16, %c0_i32_17 : i32
      %c1_i32_18 = arith.constant 1 : i32
      %10 = arith.select %9, %c1_i32_18, %c16_i32_16 : i32
      %11 = arith.remsi %8, %10 : i32
      %c0_i32_19 = arith.constant 0 : i32
      %12 = arith.cmpi ne, %11, %c0_i32_19 : i32
      %c0_i32_20 = arith.constant 0 : i32
      %13 = arith.cmpi slt, %11, %c0_i32_20 : i32
      %c0_i32_21 = arith.constant 0 : i32
      %14 = arith.cmpi slt, %10, %c0_i32_21 : i32
      %15 = arith.xori %13, %14 : i1
      %16 = arith.andi %15, %12 : i1
      %17 = arith.addi %11, %10 : i32
      %18 = arith.select %16, %17, %11 : i32
      %c0_i32_22 = arith.constant 0 : i32
      %c0_i32_23 = arith.constant 0 : i32
      %19 = tpu.memref_slice %arg2[%c0_i32_22, %c0_i32_23] : memref<64x128xf32, #tpu.memory_space<any>> -> memref<1x128xf32, #tpu.memory_space<any>>
      %c0_i32_24 = arith.constant 0 : i32
      %20 = tpu.memref_slice %arg4[%8, %c0_i32_24] : memref<16x128xf32, #tpu.memory_space<vmem>> -> memref<1x128xf32, #tpu.memory_space<vmem>>
      %21 = tpu.memref_slice %arg5[%18] : memref<16x!tpu.dma_semaphore, #tpu.memory_space<semaphore_mem>> -> memref<1x!tpu.dma_semaphore, #tpu.memory_space<semaphore_mem>>
      %22 = tpu.memref_squeeze %21 : memref<1x!tpu.dma_semaphore, #tpu.memory_space<semaphore_mem>> -> memref<!tpu.dma_semaphore, #tpu.memory_space<semaphore_mem>>
      tpu.wait_dma2 semaphore(%22 : memref<!tpu.dma_semaphore, #tpu.memory_space<semaphore_mem>>) src(%19 : memref<1x128xf32, #tpu.memory_space<any>>) dst(%20 : memref<1x128xf32, #tpu.memory_space<vmem>>)
      %23 = arith.addi %0, %7 : i32
      %24 = arith.index_cast %23 : i32 to index
      %25 = memref.load %arg1[%24] : memref<16xi32, #tpu.memory_space<smem>>
      %c16_i32_25 = arith.constant 16 : i32
      %c0_i32_26 = arith.constant 0 : i32
      %26 = arith.cmpi eq, %c16_i32_25, %c0_i32_26 : i32
      %c1_i32_27 = arith.constant 1 : i32
      %27 = arith.select %26, %c1_i32_27, %c16_i32_25 : i32
      %28 = arith.remsi %7, %27 : i32
      %c0_i32_28 = arith.constant 0 : i32
      %29 = arith.cmpi ne, %28, %c0_i32_28 : i32
      %c0_i32_29 = arith.constant 0 : i32
      %30 = arith.cmpi slt, %28, %c0_i32_29 : i32
      %c0_i32_30 = arith.constant 0 : i32
      %31 = arith.cmpi slt, %27, %c0_i32_30 : i32
      %32 = arith.xori %30, %31 : i1
      %33 = arith.andi %32, %29 : i1
      %34 = arith.addi %28, %27 : i32
      %35 = arith.select %33, %34, %28 : i32
      %c0_i32_31 = arith.constant 0 : i32
      %36 = tpu.memref_slice %arg2[%25, %c0_i32_31] : memref<64x128xf32, #tpu.memory_space<any>> -> memref<1x128xf32, #tpu.memory_space<any>>
      %c0_i32_32 = arith.constant 0 : i32
      %37 = tpu.memref_slice %arg4[%7, %c0_i32_32] : memref<16x128xf32, #tpu.memory_space<vmem>> -> memref<1x128xf32, #tpu.memory_space<vmem>>
      %38 = tpu.memref_slice %arg5[%35] : memref<16x!tpu.dma_semaphore, #tpu.memory_space<semaphore_mem>> -> memref<1x!tpu.dma_semaphore, #tpu.memory_space<semaphore_mem>>
      %39 = tpu.memref_squeeze %38 : memref<1x!tpu.dma_semaphore, #tpu.memory_space<semaphore_mem>> -> memref<!tpu.dma_semaphore, #tpu.memory_space<semaphore_mem>>
      tpu.enqueue_dma source(%36 : memref<1x128xf32, #tpu.memory_space<any>>) target(%37 : memref<1x128xf32, #tpu.memory_space<vmem>>) target_semaphore(%39 : memref<!tpu.dma_semaphore, #tpu.memory_space<semaphore_mem>>)
    }
    %c0_i32_5 = arith.constant 0 : i32
    %c0_i32_6 = arith.constant 0 : i32
    %c16_i32_7 = arith.constant 16 : i32
    %3 = arith.addi %c0_i32_6, %c16_i32_7 : i32
    %c1_i32_8 = arith.constant 1 : i32
    scf.for %arg6 = %c0_i32_6 to %3 step %c1_i32_8  : i32 {
      %c1_i32_13 = arith.constant 1 : i32
      %6 = arith.muli %arg6, %c1_i32_13 : i32
      %c0_i32_14 = arith.constant 0 : i32
      %7 = arith.addi %c0_i32_14, %6 : i32
      %c16_i32_15 = arith.constant 16 : i32
      %c0_i32_16 = arith.constant 0 : i32
      %8 = arith.cmpi eq, %c16_i32_15, %c0_i32_16 : i32
      %c1_i32_17 = arith.constant 1 : i32
      %9 = arith.select %8, %c1_i32_17, %c16_i32_15 : i32
      %10 = arith.remsi %7, %9 : i32
      %c0_i32_18 = arith.constant 0 : i32
      %11 = arith.cmpi ne, %10, %c0_i32_18 : i32
      %c0_i32_19 = arith.constant 0 : i32
      %12 = arith.cmpi slt, %10, %c0_i32_19 : i32
      %c0_i32_20 = arith.constant 0 : i32
      %13 = arith.cmpi slt, %9, %c0_i32_20 : i32
      %14 = arith.xori %12, %13 : i1
      %15 = arith.andi %14, %11 : i1
      %16 = arith.addi %10, %9 : i32
      %17 = arith.select %15, %16, %10 : i32
      %c0_i32_21 = arith.constant 0 : i32
      %c0_i32_22 = arith.constant 0 : i32
      %18 = tpu.memref_slice %arg2[%c0_i32_21, %c0_i32_22] : memref<64x128xf32, #tpu.memory_space<any>> -> memref<1x128xf32, #tpu.memory_space<any>>
      %c0_i32_23 = arith.constant 0 : i32
      %19 = tpu.memref_slice %arg4[%7, %c0_i32_23] : memref<16x128xf32, #tpu.memory_space<vmem>> -> memref<1x128xf32, #tpu.memory_space<vmem>>
      %20 = tpu.memref_slice %arg5[%17] : memref<16x!tpu.dma_semaphore, #tpu.memory_space<semaphore_mem>> -> memref<1x!tpu.dma_semaphore, #tpu.memory_space<semaphore_mem>>
      %21 = tpu.memref_squeeze %20 : memref<1x!tpu.dma_semaphore, #tpu.memory_space<semaphore_mem>> -> memref<!tpu.dma_semaphore, #tpu.memory_space<semaphore_mem>>
      tpu.wait_dma2 semaphore(%21 : memref<!tpu.dma_semaphore, #tpu.memory_space<semaphore_mem>>) src(%18 : memref<1x128xf32, #tpu.memory_space<any>>) dst(%19 : memref<1x128xf32, #tpu.memory_space<vmem>>)
    }
    %c16_i32_9 = arith.constant 16 : i32
    %c0 = arith.constant 0 : index
    %c0_10 = arith.constant 0 : index
    %4 = vector.load %arg4[%c0, %c0_10] : memref<16x128xf32, #tpu.memory_space<vmem>>, vector<16x128xf32>
    %c0_11 = arith.constant 0 : index
    %c0_12 = arith.constant 0 : index
    %5 = vector.load %arg3[%c0_11, %c0_12] : memref<16x128xf32, #tpu.memory_space<vmem>>, vector<16x128xf32>
    tpu.vector_store %arg3[%c0_11, %c0_12], %4 {strides = array<i32>} : memref<16x128xf32, #tpu.memory_space<vmem>>, vector<16x128xf32>,
    return
  }
  func.func @transform_1(%arg0: i32, %arg1: memref<16xi32, #tpu.memory_space<smem>>) -> (i32, i32) {
    %c0_i32 = arith.constant 0 : i32
    %c0_i32_0 = arith.constant 0 : i32
    return %arg0, %c0_i32 : i32, i32
  }
}

</mosaic_0001>

<llo_original>
// kernel: tpu_custom_call.1
$region0: #{tpu_custom_call.1}
  #allocation0 [shape = 'u32[]', space=smem, size = 0x4, offset = 0x4, fixed_abs, tag = 'smem constant byte address 0x4 - core index']
  #allocation1 [shape = 'u32[144,128]{1,0:T(1,128)}', space=vmem, size = 0x12000, scoped, tag = 'internal scratch']
  #allocation2 [shape = 'f32[16,128]{1,0:T(8,128)}', space=vmem, size = 0x2000, scoped, tag = 'scratch operand']
  #allocation3 [shape = 's32[16]{0}', space=sflag, size = 0x40, scoped, tag = 'scratch operand']
  #allocation4 [shape = 's32[1]{0}', space=sflag, size = 0x4, scoped, tag = 'scoped memory for tpu_custom_call.1']
  #allocation5 [shape = 'u8[512]{0}', space=smem, size = 0x200, scoped, tag = 'prefetched SMEM operand 0']
  #allocation8 [shape = 's32[]', space=sflag, size = 0x4, offset = 0, fixed_abs, tag = 'sflag constant byte address 0x0 - dummy sync flag']
  #allocation9 [shape = 's32[]', space=sflag, size = 0x4, offset = 0, fixed_abs, tag = 'sflag constant byte address 0x0 - dummy sync flag']
  #allocation10 [shape = 'u32[]', space=smem, size = 0x4, offset = 0x44, fixed_abs, tag = 'smem constant byte address 0x44 - assertion arg 0']
  #allocation11 [shape = 'u32[]', space=smem, size = 0x4, offset = 0x48, fixed_abs, tag = 'smem constant byte address 0x48 - assertion arg 1']
  %s0 = inlined_call_operand.hbm [shape: s32[16], index: 0, kind: input, shape index: {}]
  %s1 = inlined_call_operand.hbm [shape: f32[64,128], index: 1, kind: input, shape index: {}]
  %s2 = inlined_call_operand.hbm [shape: f32[16,128], index: 2, kind: output, shape index: {}]
  %s3 = sld [smem:[#allocation0]]
  $region28: #{tpu_custom_call.1} parent=0
    _
  %s5 = ssub.s32 1, %s3
  %s6 = scalar_select 0, %s5, %s3
  %8 = dma.hbm_to_smem %s0, 16, [#allocation5], [#allocation4]
  %9 = dma.done [#allocation4], 16
  %10 = sfence
  $region1: #{tpu_custom_call.1} parent=0
    #allocation6 [shape = 'u8[8192]{0}', space=vmem, size = 0x2000, scoped, tag = 'output window, operand 0, single buffered']
    #allocation7 [shape = 's32[1]{0}', space=sflag, size = 0x4, scoped, tag = 'scoped memory for tpu_custom_call.1']
    %11 = vsyncpa [#allocation7], 0
    %s12 = smul.u32 0, 16
    loop: start=0, step=1, limit=16
    $region2: #{tpu_custom_call.1} parent=1 // loop_pre_header
      _
    $region3: #{tpu_custom_call.1} parent=1 // loop_header
      %s14 = sphi 0, %s18
      %p15 = scmp.ge.s32.totalorder %s14, 16
    $region4: #{tpu_custom_call.1} parent=1 // loop_header_branch
      %17 = sbr.rel (%p15) target = $region8
    $region5: #{tpu_custom_call.1} parent=1 // loop_body
      %s19 = sadd.s32 %s12, %s14
      %s20 = sld [smem:[#allocation5 + %s19]]
      %p21 = scmp.lt.s32.totalorder %s14, 0
      %s22 = ssub.s32 0, %s14
      %s23 = scalar_select %p21, %s22, %s14
      %s24 = sand.u32 %s23, 15
      %s25 = ssub.s32 0, %s24
      %s26 = scalar_select %p21, %s25, %s24
      %p27 = scmp.ne.s32.totalorder %s26, 0
      %p28 = scmp.lt.s32.totalorder %s26, 0
      %p29 = pnand %p28, %p27
      %p30 = pneg %p29
      %s31 = sadd.s32 %s26, 16
      %s32 = scalar_select %p30, %s31, %s26
      %s33 = smul.addr %s20, 16
      %s34 = scalar_lea.hbm %s1, %s33
      %s35 = scalar_lea.vmem [#allocation2], %s14
      %s36 = scalar_lea.sflag [#allocation3], %s32
      // Predicated region
      $region9: #{tpu_custom_call.1} parent=5 // pred_check
        _
      $region10: #{tpu_custom_call.1} parent=5 // pred_check_branch
        %38 = sbr.rel target = $region12
      $region11: #{tpu_custom_call.1} parent=5 // pred_region
        %39 = sst [smem:[#allocation10]] [#allocation9]
        %40 = sst [smem:[#allocation11]] [#allocation8]
      $region12: #{tpu_custom_call.1} parent=5 // pred_fallthru
        _
      %42 = shalt.err (0)
      %s44 = sshll.u32 %s35, 4
      %s45 = int_to_ptr.vmem [resolvable:$true] %s44
      %47 = dma.hbm_to_vmem [thread:$0]  %s34, 16, %s45, %s36
    $region6: #{tpu_custom_call.1} parent=1 // loop_footer
      %s18 = sadd.s32 1, %s14
    $region7: #{tpu_custom_call.1} parent=1 // loop_footer_branch
      %13 = sbr.rel target = $region3
    $region8: #{tpu_custom_call.1} parent=1 // loop_exit
      _
    loop: start=0, step=1, limit=16
    $region13: #{tpu_custom_call.1} parent=1 // loop_pre_header
      _
    $region14: #{tpu_custom_call.1} parent=1 // loop_header
      %s49 = sphi 0, %s53
      %p50 = scmp.ge.s32.totalorder %s49, 16
    $region15: #{tpu_custom_call.1} parent=1 // loop_header_branch
      %52 = sbr.rel (%p50) target = $region19
    $region16: #{tpu_custom_call.1} parent=1 // loop_body
      %p54 = scmp.lt.s32.totalorder %s49, 0
      %s55 = ssub.s32 0, %s49
      %s56 = scalar_select %p54, %s55, %s49
      %s57 = sand.u32 %s56, 15
      %s58 = ssub.s32 0, %s57
      %s59 = scalar_select %p54, %s58, %s57
      %p60 = scmp.ne.s32.totalorder %s59, 0
      %p61 = scmp.lt.s32.totalorder %s59, 0
      %p62 = pnand %p61, %p60
      %p63 = pneg %p62
      %s64 = sadd.s32 %s59, 16
      %s65 = scalar_select %p63, %s64, %s59
      %s66 = scalar_lea.sflag [#allocation3], %s65
      %s67 = smul.u32 1, 1
      %s68 = sshll.u32 %s67, 4
      %69 = dma.done %s66, %s68
    $region17: #{tpu_custom_call.1} parent=1 // loop_footer
      %s53 = sadd.s32 1, %s49
    $region18: #{tpu_custom_call.1} parent=1 // loop_footer_branch
      %48 = sbr.rel target = $region14
    $region19: #{tpu_custom_call.1} parent=1 // loop_exit
      _
    %v70 = vld [vmem:[#allocation2] sm:$0xff]
    %v71 = vld [vmem:[#allocation2 + $0x8] sm:$0xff]
    %72 = vst [vmem:[#allocation6] sm:$0xff] %v70
    %73 = vst [vmem:[#allocation6 + $0x8] sm:$0xff] %v71
    // Predicated region
    $region20: #{tpu_custom_call.1} parent=1 // pred_check
      _
    $region21: #{tpu_custom_call.1} parent=1 // pred_check_branch
      %75 = sbr.rel (0) target = $region23
    $region22: #{tpu_custom_call.1} parent=1 // pred_region
      %s77 = ssub.s32 256, 256
      %78 = vsyncadd [#allocation7], %s77
      %s79 = sshll.u32 [#allocation6], 4
      %s80 = int_to_ptr.vmem [resolvable:$true] %s79
      %85 = dma.vmem_to_hbm [thread:$0]  %s80, 256, %s2, [#allocation7], 128, 128, 8
    $region23: #{tpu_custom_call.1} parent=1 // pred_fallthru
      _
    // Predicated region
    $region24: #{tpu_custom_call.1} parent=1 // pred_check
      _
    $region25: #{tpu_custom_call.1} parent=1 // pred_check_branch
      %87 = sbr.rel (0) target = $region27
    $region26: #{tpu_custom_call.1} parent=1 // pred_region
      %88 = dma.done [#allocation7], 256
    $region27: #{tpu_custom_call.1} parent=1 // pred_fallthru
      _
    %89 = vsyncpa [#allocation7], 1
  %90 = vsyncmov [#allocation3]
  %s91 = vpop.sfrf %90
  %p92 = scmp.eq.s32.totalorder %s91, 0
  %p93 = pneg %p92
  %95 = shalt.err (%p93)
  %s96 = scalar_lea.sflag [#allocation3], 1
  %97 = vsyncmov %s96
  %s98 = vpop.sfrf %97
  %p99 = scmp.eq.s32.totalorder %s98, 0
  %p100 = pneg %p99
  %102 = shalt.err (%p100)
  %s103 = scalar_lea.sflag [#allocation3], 2
  %104 = vsyncmov %s103
  %s105 = vpop.sfrf %104
  %p106 = scmp.eq.s32.totalorder %s105, 0
  %p107 = pneg %p106
  %109 = shalt.err (%p107)
  %s110 = scalar_lea.sflag [#allocation3], 3
  %111 = vsyncmov %s110
  %s112 = vpop.sfrf %111
  %p113 = scmp.eq.s32.totalorder %s112, 0
  %p114 = pneg %p113
  %116 = shalt.err (%p114)
  %s117 = scalar_lea.sflag [#allocation3], 4
  %118 = vsyncmov %s117
  %s119 = vpop.sfrf %118
  %p120 = scmp.eq.s32.totalorder %s119, 0
  %p121 = pneg %p120
  %123 = shalt.err (%p121)
  %s124 = scalar_lea.sflag [#allocation3], 5
  %125 = vsyncmov %s124
  %s126 = vpop.sfrf %125
  %p127 = scmp.eq.s32.totalorder %s126, 0
  %p128 = pneg %p127
  %130 = shalt.err (%p128)
  %s131 = scalar_lea.sflag [#allocation3], 6
  %132 = vsyncmov %s131
  %s133 = vpop.sfrf %132
  %p134 = scmp.eq.s32.totalorder %s133, 0
  %p135 = pneg %p134
  %137 = shalt.err (%p135)
  %s138 = scalar_lea.sflag [#allocation3], 7
  %139 = vsyncmov %s138
  %s140 = vpop.sfrf %139
  %p141 = scmp.eq.s32.totalorder %s140, 0
  %p142 = pneg %p141
  %144 = shalt.err (%p142)
  %s145 = scalar_lea.sflag [#allocation3], 8
  %146 = vsyncmov %s145
  %s147 = vpop.sfrf %146
  %p148 = scmp.eq.s32.totalorder %s147, 0
  %p149 = pneg %p148
  %151 = shalt.err (%p149)
  %s152 = scalar_lea.sflag [#allocation3], 9
  %153 = vsyncmov %s152
  %s154 = vpop.sfrf %153
  %p155 = scmp.eq.s32.totalorder %s154, 0
  %p156 = pneg %p155
  %158 = shalt.err (%p156)
  %s159 = scalar_lea.sflag [#allocation3], 10
  %160 = vsyncmov %s159
  %s161 = vpop.sfrf %160
  %p162 = scmp.eq.s32.totalorder %s161, 0
  %p163 = pneg %p162
  %165 = shalt.err (%p163)
  %s166 = scalar_lea.sflag [#allocation3], 11
  %167 = vsyncmov %s166
  %s168 = vpop.sfrf %167
  %p169 = scmp.eq.s32.totalorder %s168, 0
  %p170 = pneg %p169
  %172 = shalt.err (%p170)
  %s173 = scalar_lea.sflag [#allocation3], 12
  %174 = vsyncmov %s173
  %s175 = vpop.sfrf %174
  %p176 = scmp.eq.s32.totalorder %s175, 0
  %p177 = pneg %p176
  %179 = shalt.err (%p177)
  %s180 = scalar_lea.sflag [#allocation3], 13
  %181 = vsyncmov %s180
  %s182 = vpop.sfrf %181
  %p183 = scmp.eq.s32.totalorder %s182, 0
  %p184 = pneg %p183
  %186 = shalt.err (%p184)
  %s187 = scalar_lea.sflag [#allocation3], 14
  %188 = vsyncmov %s187
  %s189 = vpop.sfrf %188
  %p190 = scmp.eq.s32.totalorder %s189, 0
  %p191 = pneg %p190
  %193 = shalt.err (%p191)
  %s194 = scalar_lea.sflag [#allocation3], 15
  %195 = vsyncmov %s194
  %s196 = vpop.sfrf %195
  %p197 = scmp.eq.s32.totalorder %s196, 0
  %p198 = pneg %p197
  %200 = shalt.err (%p198)

</llo_original>
